<compile_context>
chip_gen: v7x
topology: tpu7x:2x2x1
jax: 0.10.0
libtpu: 0.0.40
codegen_flags: <defaults>
</compile_context>

<pallas_src>
import functools
import math

import jax
import jax.numpy as jnp
from jax import lax
from jax.experimental import pallas as pl
from jax.experimental.pallas import tpu as pltpu

_NEG_INF = -1e30


def _pick_tile(n: int, pref: int) -> int:
    """Largest tile <= pref that divides n; falls back to the full dim."""
    if n <= pref:
        return n
    for t in (pref, pref // 2, pref // 4):
        if t >= 1 and n % t == 0:
            return t
    return n


# --------------------------------------------------------------------------
# Tiled matmul kernel (used for the four bias-free Linear projections)
# --------------------------------------------------------------------------
def _matmul_kernel(a_ref, b_ref, o_ref, acc_ref):
    @pl.when(pl.program_id(2) == 0)
    def _init():
        acc_ref[...] = jnp.zeros_like(acc_ref)

    acc_ref[...] += jnp.dot(a_ref[...], b_ref[...],
                            preferred_element_type=jnp.float32)

    @pl.when(pl.program_id(2) == pl.num_programs(2) - 1)
    def _store():
        o_ref[...] = acc_ref[...].astype(o_ref.dtype)


def matmul(a: jax.Array, b: jax.Array, *, tm=128, tn=128, tk=256) -> jax.Array:
    """a: (M, K), b: (K, N) -> (M, N) in a.dtype, f32 accumulation on the MXU."""
    M, K = a.shape
    K2, N = b.shape
    assert K == K2
    tm = _pick_tile(M, tm)
    tn = _pick_tile(N, tn)
    tk = _pick_tile(K, tk)
    return pl.pallas_call(
        _matmul_kernel,
        out_shape=jax.ShapeDtypeStruct((M, N), a.dtype),
        grid_spec=pltpu.PrefetchScalarGridSpec(
            num_scalar_prefetch=0,
            grid=(M // tm, N // tn, K // tk),
            in_specs=[
                pl.BlockSpec((tm, tk), lambda i, j, k: (i, k)),
                pl.BlockSpec((tk, tn), lambda i, j, k: (k, j)),
            ],
            out_specs=pl.BlockSpec((tm, tn), lambda i, j, k: (i, j)),
            scratch_shapes=[pltpu.VMEM((tm, tn), jnp.float32)],
        ),
        compiler_params=pltpu.CompilerParams(
            dimension_semantics=("parallel", "parallel", "arbitrary")),
    )(a, b)


# --------------------------------------------------------------------------
# Flash-attention kernel (scaled_dot_product_attention, per batch*head slice)
# --------------------------------------------------------------------------
def _flash_attn_kernel(q_ref, k_ref, v_ref, o_ref, m_sc, l_sc, acc_sc,
                       *, scale: float, causal: bool, tq: int, tk: int):
    qi = pl.program_id(1)
    ki = pl.program_id(2)

    @pl.when(ki == 0)
    def _init():
        m_sc[...] = jnp.full_like(m_sc, _NEG_INF)
        l_sc[...] = jnp.zeros_like(l_sc)
        acc_sc[...] = jnp.zeros_like(acc_sc)

    def _compute():
        q = q_ref[0].astype(jnp.float32) * scale            # (tq, D)
        k = k_ref[0].astype(jnp.float32)                    # (tk, D)
        v = v_ref[0].astype(jnp.float32)                    # (tk, D)
        # s = q @ k^T on the MXU (contract head_dim), f32 accumulation.
        s = lax.dot_general(q, k, (((1,), (1,)), ((), ())),
                            preferred_element_type=jnp.float32)  # (tq, tk)
        if causal:
            q_idx = qi * tq + lax.broadcasted_iota(jnp.int32, (tq, tk), 0)
            k_idx = ki * tk + lax.broadcasted_iota(jnp.int32, (tq, tk), 1)
            s = jnp.where(q_idx >= k_idx, s, _NEG_INF)
        m_prev = m_sc[...]
        m_new = jnp.maximum(m_prev, s.max(axis=-1, keepdims=True))
        alpha = jnp.exp(m_prev - m_new)
        p = jnp.exp(s - m_new)
        l_sc[...] = alpha * l_sc[...] + p.sum(axis=-1, keepdims=True)
        acc_sc[...] = alpha * acc_sc[...] + jnp.dot(
            p, v, preferred_element_type=jnp.float32)
        m_sc[...] = m_new

    if causal:
        # Skip k-tiles that lie entirely in the masked (future) region.
        @pl.when(qi * tq + (tq - 1) >= ki * tk)
        def _():
            _compute()
    else:
        _compute()

    @pl.when(ki == pl.num_programs(2) - 1)
    def _finalize():
        o_ref[0] = (acc_sc[...] / l_sc[...]).astype(o_ref.dtype)


def flash_attention(q: jax.Array, k: jax.Array, v: jax.Array, *,
                    is_causal: bool = False, tq=128, tk=128) -> jax.Array:
    """q: (BH, Lq, D), k/v: (BH, Lk, D) -> (BH, Lq, D) in q.dtype."""
    BH, Lq, D = q.shape
    _, Lk, _ = k.shape
    tq = _pick_tile(Lq, tq)
    tk = _pick_tile(Lk, tk)
    scale = 1.0 / math.sqrt(D)
    kernel = functools.partial(_flash_attn_kernel, scale=scale,
                               causal=is_causal, tq=tq, tk=tk)
    return pl.pallas_call(
        kernel,
        out_shape=jax.ShapeDtypeStruct((BH, Lq, D), q.dtype),
        grid_spec=pltpu.PrefetchScalarGridSpec(
            num_scalar_prefetch=0,
            grid=(BH, Lq // tq, Lk // tk),
            in_specs=[
                pl.BlockSpec((1, tq, D), lambda b, i, j: (b, i, 0)),
                pl.BlockSpec((1, tk, D), lambda b, i, j: (b, j, 0)),
                pl.BlockSpec((1, tk, D), lambda b, i, j: (b, j, 0)),
            ],
            out_specs=pl.BlockSpec((1, tq, D), lambda b, i, j: (b, i, 0)),
            scratch_shapes=[
                pltpu.VMEM((tq, 1), jnp.float32),   # running max m
                pltpu.VMEM((tq, 1), jnp.float32),   # running denom l
                pltpu.VMEM((tq, D), jnp.float32),   # output accumulator
            ],
        ),
        compiler_params=pltpu.CompilerParams(
            dimension_semantics=("parallel", "parallel", "arbitrary")),
    )(q, k, v)


# --------------------------------------------------------------------------
# Full Attention.forward (no mask, no cache, no rope, dropout=0 / eval mode)
# --------------------------------------------------------------------------
def attention_forward(queries, keys, values, wq, wk, wv, wo, *,
                      n_heads: int, head_dim: int, is_causal: bool = False):
    B, Lq, dim = queries.shape
    Lk = keys.shape[1]
    inner = n_heads * head_dim

    xq = matmul(queries.reshape(B * Lq, dim), wq).reshape(B, Lq, n_heads, head_dim)
    xk = matmul(keys.reshape(B * Lk, dim), wk).reshape(B, Lk, n_heads, head_dim)
    xv = matmul(values.reshape(B * Lk, dim), wv).reshape(B, Lk, n_heads, head_dim)

    # (B, L, H, D) -> (B*H, L, D)   (layout plumbing in the wrapper)
    xq = xq.transpose(0, 2, 1, 3).reshape(B * n_heads, Lq, head_dim)
    xk = xk.transpose(0, 2, 1, 3).reshape(B * n_heads, Lk, head_dim)
    xv = xv.transpose(0, 2, 1, 3).reshape(B * n_heads, Lk, head_dim)

    out = flash_attention(xq, xk, xv, is_causal=is_causal)      # (B*H, Lq, D)

    out = (out.reshape(B, n_heads, Lq, head_dim)
              .transpose(0, 2, 1, 3)
              .reshape(B * Lq, inner))
    return matmul(out, wo).reshape(B, Lq, dim)


def attention_ref(queries, keys, values, wq, wk, wv, wo, *,
                  n_heads: int, head_dim: int, is_causal: bool = False):
    B, Lq, _ = queries.shape
    Lk = keys.shape[1]
    xq = (queries @ wq).reshape(B, Lq, n_heads, head_dim).transpose(0, 2, 1, 3)
    xk = (keys @ wk).reshape(B, Lk, n_heads, head_dim).transpose(0, 2, 1, 3)
    xv = (values @ wv).reshape(B, Lk, n_heads, head_dim).transpose(0, 2, 1, 3)
    s = jnp.einsum('bhqd,bhkd->bhqk', xq, xk) / math.sqrt(head_dim)
    if is_causal:
        mask = jnp.tril(jnp.ones((Lq, Lk), dtype=bool))
        s = jnp.where(mask, s, -jnp.inf)
    p = jax.nn.softmax(s, axis=-1)
    o = jnp.einsum('bhqk,bhkd->bhqd', p, xv)
    o = o.transpose(0, 2, 1, 3).reshape(B, Lq, n_heads * head_dim)
    return o @ wo


if __name__ == "__main__":
    key = jax.random.PRNGKey(0)
    batch, seq, dim = 2, 8, 32
    n_heads, head_dim = 4, 8
    inner = n_heads * head_dim

    k_q, k_k, k_v, k_wq, k_wk, k_wv, k_wo = jax.random.split(key, 7)
    queries = jax.random.normal(k_q, (batch, seq, dim), dtype=jnp.float32)
    keys_in = jax.random.normal(k_k, (batch, seq, dim), dtype=jnp.float32)
    values = jax.random.normal(k_v, (batch, seq, dim), dtype=jnp.float32)

    # nn.Linear(bias=False) weights, stored in (in, out) layout.
    s_in = 1.0 / math.sqrt(dim)
    s_out = 1.0 / math.sqrt(inner)
    wq = jax.random.uniform(k_wq, (dim, inner), jnp.float32, -s_in, s_in)
    wk = jax.random.uniform(k_wk, (dim, inner), jnp.float32, -s_in, s_in)
    wv = jax.random.uniform(k_wv, (dim, inner), jnp.float32, -s_in, s_in)
    wo = jax.random.uniform(k_wo, (inner, dim), jnp.float32, -s_out, s_out)

    out = attention_forward(queries, keys_in, values, wq, wk, wv, wo,
                            n_heads=n_heads, head_dim=head_dim,
                            is_causal=False)
    out = jax.block_until_ready(out)

    ref = attention_ref(queries, keys_in, values, wq, wk, wv, wo,
                        n_heads=n_heads, head_dim=head_dim, is_causal=False)
    assert out.shape == (batch, seq, dim)
    assert jnp.allclose(out, ref, atol=2e-5, rtol=2e-5), \
        float(jnp.max(jnp.abs(out - ref)))

    print("KERNEL_OK")
</pallas_src>

<mosaic_0001>
module attributes {stable_mosaic.version = 11 : i64} {
  func.func @_matmul_kernel(%arg0: i32, %arg1: i32, %arg2: i32, %arg3: memref<16x32xf32, #tpu.memory_space<vmem>>, %arg4: memref<32x32xf32, #tpu.memory_space<vmem>>, %arg5: memref<16x32xf32, #tpu.memory_space<vmem>>, %arg6: memref<16x32xf32, #tpu.memory_space<vmem>>) attributes {dimension_semantics = [#tpu.dimension_semantics<parallel>, #tpu.dimension_semantics<parallel>, #tpu.dimension_semantics<arbitrary>], iteration_bounds = array<i64: 1, 1, 1>, scalar_prefetch = 0 : i64, scratch_operands = 1 : i64, tpu.core_type = #tpu.core_type<tc>, window_params = [{transform_indices = @transform_0, window_bounds = array<i64: 16, 32>}, {transform_indices = @transform_1, window_bounds = array<i64: 32, 32>}, {transform_indices = @transform_2, window_bounds = array<i64: 16, 32>}]} {
    %c0_i32 = arith.constant 0 : i32
    %0 = arith.cmpi eq, %arg2, %c0_i32 : i32
    %1 = arith.extui %0 : i1 to i32
    %c0_i32_0 = arith.constant 0 : i32
    %2 = arith.cmpi ne, %1, %c0_i32_0 : i32
    scf.if %2 {
      %cst_10 = arith.constant 0.000000e+00 : f32
      %12 = vector.broadcast %cst_10 : f32 to vector<16x32xf32>
      %c0_11 = arith.constant 0 : index
      %c0_12 = arith.constant 0 : index
      %13 = vector.load %arg6[%c0_11, %c0_12] : memref<16x32xf32, #tpu.memory_space<vmem>>, vector<16x32xf32>
      tpu.vector_store %arg6[%c0_11, %c0_12], %12 {strides = array<i32>} : memref<16x32xf32, #tpu.memory_space<vmem>>, vector<16x32xf32>,
    } else {
    }
    %c0 = arith.constant 0 : index
    %c0_1 = arith.constant 0 : index
    %3 = vector.load %arg6[%c0, %c0_1] : memref<16x32xf32, #tpu.memory_space<vmem>>, vector<16x32xf32>
    %c0_2 = arith.constant 0 : index
    %c0_3 = arith.constant 0 : index
    %4 = vector.load %arg3[%c0_2, %c0_3] : memref<16x32xf32, #tpu.memory_space<vmem>>, vector<16x32xf32>
    %c0_4 = arith.constant 0 : index
    %c0_5 = arith.constant 0 : index
    %5 = vector.load %arg4[%c0_4, %c0_5] : memref<32x32xf32, #tpu.memory_space<vmem>>, vector<32x32xf32>
    %cst = arith.constant dense<0.000000e+00> : vector<16x32xf32>
    %6 = tpu.matmul %4, %5, %cst {dimension_numbers = #tpu.dot_dimension_numbers<[1], [0], [0], [1], [0, 0, 1, 1], [], []>} : vector<16x32xf32>, vector<32x32xf32>, vector<16x32xf32> -> vector<16x32xf32>
    %7 = arith.addf %3, %6 : vector<16x32xf32>
    %c0_6 = arith.constant 0 : index
    %c0_7 = arith.constant 0 : index
    %8 = vector.load %arg6[%c0_6, %c0_7] : memref<16x32xf32, #tpu.memory_space<vmem>>, vector<16x32xf32>
    tpu.vector_store %arg6[%c0_6, %c0_7], %7 {strides = array<i32>} : memref<16x32xf32, #tpu.memory_space<vmem>>, vector<16x32xf32>,
    %c0_i32_8 = arith.constant 0 : i32
    %9 = arith.cmpi eq, %arg2, %c0_i32_8 : i32
    %10 = arith.extui %9 : i1 to i32
    %c0_i32_9 = arith.constant 0 : i32
    %11 = arith.cmpi ne, %10, %c0_i32_9 : i32
    scf.if %11 {
      %c0_10 = arith.constant 0 : index
      %c0_11 = arith.constant 0 : index
      %12 = vector.load %arg6[%c0_10, %c0_11] : memref<16x32xf32, #tpu.memory_space<vmem>>, vector<16x32xf32>
      %c0_12 = arith.constant 0 : index
      %c0_13 = arith.constant 0 : index
      %13 = vector.load %arg5[%c0_12, %c0_13] : memref<16x32xf32, #tpu.memory_space<vmem>>, vector<16x32xf32>
      tpu.vector_store %arg5[%c0_12, %c0_13], %12 {strides = array<i32>} : memref<16x32xf32, #tpu.memory_space<vmem>>, vector<16x32xf32>,
    } else {
    }
    return
  }
  func.func @transform_0(%arg0: i32, %arg1: i32, %arg2: i32) -> (i32, i32) {
    %c0_i32 = arith.constant 0 : i32
    return %arg0, %arg2 : i32, i32
  }
  func.func @transform_1(%arg0: i32, %arg1: i32, %arg2: i32) -> (i32, i32) {
    %c0_i32 = arith.constant 0 : i32
    return %arg2, %arg1 : i32, i32
  }
  func.func @transform_2(%arg0: i32, %arg1: i32, %arg2: i32) -> (i32, i32) {
    %c0_i32 = arith.constant 0 : i32
    return %arg0, %arg1 : i32, i32
  }
}

</mosaic_0001>

<llo_original>
// kernel: tpu_custom_call.1
$region0: #{tpu_custom_call.1}
  #allocation0 [shape = 'u32[]', space=smem, size = 0x4, offset = 0x4, fixed_abs, tag = 'smem constant byte address 0x4 - core index']
  #allocation1 [shape = 'u32[144,128]{1,0:T(1,128)}', space=vmem, size = 0x12000, scoped, tag = 'internal scratch']
  #allocation2 [shape = 'f32[16,32]{1,0:T(8,128)}', space=vmem, size = 0x2000, scoped, tag = 'scratch operand']
  %s0 = inlined_call_operand.hbm [shape: f32[16,32], index: 0, kind: input, shape index: {}]
  %s1 = inlined_call_operand.hbm [shape: f32[32,32], index: 1, kind: input, shape index: {}]
  %s2 = inlined_call_operand.hbm [shape: f32[16,32], index: 2, kind: output, shape index: {}]
  %s3 = sld [smem:[#allocation0]]
  $region34: #{tpu_custom_call.1} parent=0
    _
  %s5 = ssub.s32 1, %s3
  %s6 = scalar_select 0, %s5, %s3
  $region1: #{tpu_custom_call.1} parent=0
    #allocation3 [shape = 'u8[8192]{0}', space=vmem, size = 0x2000, scoped, tag = 'input window, operand 0, single buffered']
    #allocation4 [shape = 's32[1]{0}', space=sflag, size = 0x4, scoped, tag = 'scoped memory for tpu_custom_call.1']
    #allocation5 [shape = 's32[1]{0}', space=sflag, size = 0x4, scoped, tag = 'scoped memory for tpu_custom_call.1']
    #allocation6 [shape = 'u8[16384]{0}', space=vmem, size = 0x4000, scoped, tag = 'input window, operand 1, single buffered']
    #allocation7 [shape = 's32[1]{0}', space=sflag, size = 0x4, scoped, tag = 'scoped memory for tpu_custom_call.1']
    #allocation8 [shape = 'u8[8192]{0}', space=vmem, size = 0x2000, scoped, tag = 'output window, operand 0, single buffered']
    %7 = vsyncpa [#allocation4], 0
    %8 = vsyncpa [#allocation7], 0
    %9 = vsyncpa [#allocation5], 0
    // Predicated region
    $region2: #{tpu_custom_call.1} parent=1 // pred_check
      _
    $region3: #{tpu_custom_call.1} parent=1 // pred_check_branch
      %11 = sbr.rel (0) target = $region5
    $region4: #{tpu_custom_call.1} parent=1 // pred_region
      %s13 = ssub.s32 256, 256
      %14 = vsyncadd [#allocation4], %s13
      %s15 = sshll.u32 [#allocation3], 4
      %s16 = int_to_ptr.vmem [resolvable:$true] %s15
      %21 = dma.hbm_to_vmem [thread:$0]  %s0, 256, %s16, [#allocation4], 128, 128, 8
    $region5: #{tpu_custom_call.1} parent=1 // pred_fallthru
      _
    // Predicated region
    $region6: #{tpu_custom_call.1} parent=1 // pred_check
      _
    $region7: #{tpu_custom_call.1} parent=1 // pred_check_branch
      %23 = sbr.rel (0) target = $region9
    $region8: #{tpu_custom_call.1} parent=1 // pred_region
      %s25 = ssub.s32 512, 512
      %26 = vsyncadd [#allocation7], %s25
      %s27 = sshll.u32 [#allocation6], 4
      %s28 = int_to_ptr.vmem [resolvable:$true] %s27
      %33 = dma.hbm_to_vmem [thread:$0]  %s1, 512, %s28, [#allocation7], 128, 128, 8
    $region9: #{tpu_custom_call.1} parent=1 // pred_fallthru
      _
    // Predicated region
    $region10: #{tpu_custom_call.1} parent=1 // pred_check
      _
    $region11: #{tpu_custom_call.1} parent=1 // pred_check_branch
      %35 = sbr.rel (0) target = $region13
    $region12: #{tpu_custom_call.1} parent=1 // pred_region
      %36 = dma.done [#allocation4], 256
    $region13: #{tpu_custom_call.1} parent=1 // pred_fallthru
      _
    // Predicated region
    $region14: #{tpu_custom_call.1} parent=1 // pred_check
      _
    $region15: #{tpu_custom_call.1} parent=1 // pred_check_branch
      %38 = sbr.rel (0) target = $region17
    $region16: #{tpu_custom_call.1} parent=1 // pred_region
      %39 = dma.done [#allocation7], 512
    $region17: #{tpu_custom_call.1} parent=1 // pred_fallthru
      _
    %p40 = scmp.eq.s32.totalorder 0, 0
    // Predicated region
    $region18: #{tpu_custom_call.1} parent=1 // pred_check
      %p41 = pneg %p40
    $region19: #{tpu_custom_call.1} parent=1 // pred_check_branch
      %43 = sbr.rel (%p41) target = $region21
    $region20: #{tpu_custom_call.1} parent=1 // pred_region
      %vm44 = vcmask 261120
      %45 = vst.msk [vmem:[#allocation2] sm:$0xff] %vm44, 0.0
      %46 = vst.msk [vmem:[#allocation2 + $0x8] sm:$0xff] %vm44, 0.0
    $region21: #{tpu_custom_call.1} parent=1 // pred_fallthru
      _
    %v47 = vld [vmem:[#allocation2] sm:$0xff]
    %v48 = vld [vmem:[#allocation2 + $0x8] sm:$0xff]
    %v49 = vld [vmem:[#allocation3] sm:$0xff]
    %v50 = vld [vmem:[#allocation3 + $0x8] sm:$0xff]
    %v51 = vld [vmem:[#allocation6] sm:$0xff]
    %v52 = vld [vmem:[#allocation6 + $0x8] sm:$0xff]
    %v53 = vld [vmem:[#allocation6 + $0x10] sm:$0xff]
    %v54 = vld [vmem:[#allocation6 + $0x18] sm:$0xff]
    %vm55 = vcmask 261120
    %v57 = vsel %vm55, %v49, 0
    %v60 = vsel %vm55, %v50, 0
    %62 = vmatprep.subr.mxu0 0.0
    %63 = vmatpush1.msra.mxu0 %v51
    %64 = vmatprep.subr.mxu0 0.0
    %65 = vmatpush1.msra.mxu0 %v52
    %66 = vmatprep.subr.mxu0 0.0
    %67 = vmatpush1.msra.mxu0 %v53
    %68 = vmatprep.subr.mxu0 0.0
    %69 = vmatpush1.msra.mxu0 %v54
    %70 = vmatprep.subr.mxu0 0.0
    %71 = vmatpush1.msra.mxu0 0.0
    %72 = vmatprep.subr.mxu0 0.0
    %73 = vmatpush1.msra.mxu0 0.0
    %74 = vmatprep.subr.mxu0 0.0
    %75 = vmatpush1.msra.mxu0 0.0
    %76 = vmatprep.subr.mxu0 0.0
    %77 = vmatpush1.msra.mxu0 0.0
    %78 = vmatprep.subr.mxu0 0.0
    %79 = vmatpush1.msra.mxu0 0.0
    %80 = vmatprep.subr.mxu0 0.0
    %81 = vmatpush1.msra.mxu0 0.0
    %82 = vmatprep.subr.mxu0 0.0
    %83 = vmatpush1.msra.mxu0 0.0
    %84 = vmatprep.subr.mxu0 0.0
    %85 = vmatpush1.msra.mxu0 0.0
    %86 = vmatprep.subr.mxu0 0.0
    %87 = vmatpush1.msra.mxu0 0.0
    %88 = vmatprep.subr.mxu0 0.0
    %89 = vmatpush1.msra.mxu0 0.0
    %90 = vmatprep.subr.mxu0 0.0
    %91 = vmatpush1.msra.mxu0 0.0
    %92 = vmatprep.subr.mxu0 0.0
    %93 = vmatpush1.msra.mxu0 0.0
    %94 = vmatprep.subr.mxu0 0.0
    %95 = vmatpush1.msra.mxu0 0.0
    %96 = vmatprep.subr.mxu0 0.0
    %97 = vmatpush1.msra.mxu0 0.0
    %98 = vmatprep.subr.mxu0 0.0
    %99 = vmatpush1.msra.mxu0 0.0
    %100 = vmatprep.subr.mxu0 0.0
    %101 = vmatpush1.msra.mxu0 0.0
    %102 = vmatprep.subr.mxu0 0.0
    %103 = vmatpush1.msra.mxu0 0.0
    %104 = vmatprep.subr.mxu0 0.0
    %105 = vmatpush1.msra.mxu0 0.0
    %106 = vmatprep.subr.mxu0 0.0
    %107 = vmatpush1.msra.mxu0 0.0
    %108 = vmatprep.subr.mxu0 0.0
    %109 = vmatpush1.msra.mxu0 0.0
    %110 = vmatprep.subr.mxu0 0.0
    %111 = vmatpush1.msra.mxu0 0.0
    %112 = vmatprep.subr.mxu0 0.0
    %113 = vmatpush1.msra.mxu0 0.0
    %114 = vmatprep.subr.mxu0 0.0
    %115 = vmatpush1.msra.mxu0 0.0
    %116 = vmatprep.subr.mxu0 0.0
    %117 = vmatpush1.msra.mxu0 0.0
    %118 = vmatprep.subr.mxu0 0.0
    %119 = vmatpush1.msra.mxu0 0.0
    %120 = vmatprep.subr.mxu0 0.0
    %121 = vmatpush1.msra.mxu0 0.0
    %122 = vmatprep.subr.mxu0 0.0
    %123 = vmatpush1.msra.mxu0 0.0
    %124 = vmatprep.subr.mxu0 0.0
    %125 = vmatpush1.msra.mxu0 0.0
    %126 = vmatprep.mubr.f32.mxu0 0.0
    %127 = vmatmul.mubr.f32.gmra.mrb[0].mxu0 %v57
    %v128 = vpop.f32.mrb[0].mxu0
    %v129 = vadd.f32 0.0, %v128
    %v130 = vpop.f32.mrb[0].mxu0
    %131 = vmatprep.mubr.f32.mxu0 0.0
    %132 = vmatmul.mubr.f32.gmra.mrb[0].mxu0 %v60
    %v133 = vpop.f32.mrb[0].mxu0
    %v134 = vadd.f32 0.0, %v133
    %v135 = vpop.f32.mrb[0].mxu0
    %136 = vdwg.mxu0
    %v137 = vadd.f32 %v47, %v129
    %v138 = vadd.f32 %v48, %v134
    %139 = vst.msk [vmem:[#allocation2] sm:$0xff] %vm55, %v137
    %140 = vst.msk [vmem:[#allocation2 + $0x8] sm:$0xff] %vm55, %v138
    // Predicated region
    $region22: #{tpu_custom_call.1} parent=1 // pred_check
      %p141 = pneg %p40
    $region23: #{tpu_custom_call.1} parent=1 // pred_check_branch
      %143 = sbr.rel (%p141) target = $region25
    $region24: #{tpu_custom_call.1} parent=1 // pred_region
      %v144 = vld [vmem:[#allocation2] sm:$0xff]
      %v145 = vld [vmem:[#allocation2 + $0x8] sm:$0xff]
      %146 = vst.msk [vmem:[#allocation8] sm:$0xff] %vm55, %v144
      %147 = vst.msk [vmem:[#allocation8 + $0x8] sm:$0xff] %vm55, %v145
    $region25: #{tpu_custom_call.1} parent=1 // pred_fallthru
      _
    // Predicated region
    $region26: #{tpu_custom_call.1} parent=1 // pred_check
      _
    $region27: #{tpu_custom_call.1} parent=1 // pred_check_branch
      %149 = sbr.rel (0) target = $region29
    $region28: #{tpu_custom_call.1} parent=1 // pred_region
      %s151 = ssub.s32 256, 256
      %152 = vsyncadd [#allocation5], %s151
      %s153 = sshll.u32 [#allocation8], 4
      %s154 = int_to_ptr.vmem [resolvable:$true] %s153
      %159 = dma.vmem_to_hbm [thread:$0]  %s154, 256, %s2, [#allocation5], 128, 128, 8
    $region29: #{tpu_custom_call.1} parent=1 // pred_fallthru
      _
    // Predicated region
    $region30: #{tpu_custom_call.1} parent=1 // pred_check
      _
    $region31: #{tpu_custom_call.1} parent=1 // pred_check_branch
      %161 = sbr.rel (0) target = $region33
    $region32: #{tpu_custom_call.1} parent=1 // pred_region
      %162 = dma.done [#allocation5], 256
    $region33: #{tpu_custom_call.1} parent=1 // pred_fallthru
      _
    %163 = vsyncpa [#allocation4], 1
    %164 = vsyncpa [#allocation7], 1
    %165 = vsyncpa [#allocation5], 1

</llo_original>
